<compile_context>
chip_gen: v7x
topology: tpu7x:2x2x1
jax: 0.10.0
libtpu: 0.0.40
codegen_flags: <defaults>
</compile_context>

<pallas_src>
import functools

import jax
import jax.numpy as jnp
from jax.experimental import pallas as pl
from jax.experimental.pallas import tpu as pltpu


def _make_divisible(v, divisor, min_value=None):
    if min_value is None:
        min_value = divisor
    new_v = max(min_value, int(v + divisor / 2) // divisor * divisor)
    if new_v < 0.9 * v:
        new_v += divisor
    return new_v


def _round_up(x, m):
    return (x + m - 1) // m * m


def _vmem_limit_bytes():
    """Generation-aware scoped-VMEM budget (leave headroom below physical)."""
    phys = 128 * 1024 * 1024
    try:
        info = pltpu.get_tpu_info()
        phys = int(getattr(info, "vmem_capacity_bytes", phys))
    except Exception:
        pass
    # v7x: 64 MiB physical -> 48 MiB budget; v5e/v6e: 128 MiB -> 96 MiB budget.
    return min(phys * 3 // 4, 96 * 1024 * 1024)


def _choose_hw_tile(HW, C, dtype_bytes, vmem_limit, weight_bytes):
    """Largest 128-multiple HW tile s.t. the apply pass (in + out, both
    double-buffered ~= 4 tiles) fits the VMEM budget.  No divisibility
    requirement: the grid uses cdiv and the ragged last tile is masked."""
    budget = max(vmem_limit - weight_bytes - (2 << 20), 4 << 20)
    tile = (budget // 4 // (C * dtype_bytes)) // 128 * 128
    tile = max(128, min(tile, _round_up(HW, 128)))
    return int(tile)


# --------------------------------------------------------------------------
# Fused single-pass kernel: pool + MLP + gate + apply, one batch per grid step.
# --------------------------------------------------------------------------
def _fused_se_kernel(w1_ref, b1_ref, w2_ref, b2_ref, x_ref, o_ref, *, inv_hw):
    # x_ref: (1, C, HW)   o_ref: (1, C, HW)
    # w1_ref: (hidden, C)  b1_ref: (hidden, 1)  w2_ref: (C, hidden)  b2_ref: (C, 1)
    x = x_ref[0]                                                     # (C, HW)
    xf = x.astype(jnp.float32)
    # AdaptiveAvgPool2d(1): mean over the true H*W.
    pooled = jnp.sum(xf, axis=-1, keepdims=True) * inv_hw            # (C, 1)
    # fc[0]: Linear(C -> hidden)
    h = jnp.dot(w1_ref[...], pooled, preferred_element_type=jnp.float32) + b1_ref[...]
    # fc[1]: SiLU
    h = h * jax.nn.sigmoid(h)
    # fc[2]: Linear(hidden -> C)
    z = jnp.dot(w2_ref[...], h, preferred_element_type=jnp.float32) + b2_ref[...]
    # fc[3]: Sigmoid -> channel gate, then broadcast-multiply over HW.
    gate = jax.nn.sigmoid(z)                                         # (C, 1)
    o_ref[0] = (xf * gate).astype(o_ref.dtype)


# --------------------------------------------------------------------------
# Fallback pass 1: streaming spatial sum (ragged last tile masked in-kernel).
# --------------------------------------------------------------------------
def _pool_kernel(x_ref, sum_ref, *, hw, hw_tile, ragged):
    hw_i = pl.program_id(1)

    @pl.when(hw_i == 0)
    def _():
        sum_ref[...] = jnp.zeros_like(sum_ref)

    x = x_ref[0].astype(jnp.float32)                                 # (C, hw_tile)
    if ragged:
        col = jax.lax.broadcasted_iota(jnp.int32, x.shape, 1) + hw_i * hw_tile
        x = jnp.where(col < hw, x, jnp.float32(0.0))
    sum_ref[...] += jnp.sum(x, axis=-1, keepdims=True)[None, :, :]   # (1, C, 1)


# --------------------------------------------------------------------------
# Fallback pass 2: broadcast-multiply x * gate (pure HBM stream).
# --------------------------------------------------------------------------
def _apply_kernel(gate_ref, x_ref, o_ref):
    o_ref[...] = (x_ref[...].astype(jnp.float32) * gate_ref[...]).astype(o_ref.dtype)


def se_layer(x_nchw, w1, b1, w2, b2, *, alias_input=False):
    """SELayer forward. x_nchw: (B, C, H, W). Weights in PyTorch Linear
    convention: w1 (hidden, C), b1 (hidden,), w2 (C, hidden), b2 (C,)."""
    B, C, H, W = x_nchw.shape
    HW = H * W
    hidden = w1.shape[0]
    x_dtype = x_nchw.dtype
    dtype_bytes = jnp.dtype(x_dtype).itemsize

    # Flattening the spatial dims is a metadata-only reshape (no HBM copy).
    x_flat = x_nchw.reshape(B, C, HW)

    # Tiny weights: keep PyTorch orientation, make biases column vectors.
    w1_f = w1.astype(jnp.float32)                      # (hidden, C)
    b1_c = b1.reshape(hidden, 1).astype(jnp.float32)   # (hidden, 1)
    w2_f = w2.astype(jnp.float32)                      # (C, hidden)
    b2_c = b2.reshape(C, 1).astype(jnp.float32)        # (C, 1)
    weight_bytes = 4 * (2 * hidden * C + hidden + C)

    vmem_limit = _vmem_limit_bytes()
    const2 = lambda *_: (0, 0)

    # ---- Fused single-pass path: per-batch (C, HW) slab resident in VMEM ----
    slab_bytes = C * HW * dtype_bytes
    fused_ok = (4 * slab_bytes + weight_bytes + (2 << 20)) <= vmem_limit

    if fused_ok:
        # NOTE: on v7x (2 TCs) a B==1 call serializes onto one core; the
        # fallback path below splits HW across cores in the apply pass instead.
        out_flat = pl.pallas_call(
            functools.partial(_fused_se_kernel, inv_hw=1.0 / float(HW)),
            out_shape=jax.ShapeDtypeStruct((B, C, HW), x_dtype),
            grid_spec=pltpu.PrefetchScalarGridSpec(
                num_scalar_prefetch=0,
                grid=(B,),
                in_specs=[
                    pl.BlockSpec((hidden, C), const2),                   # w1
                    pl.BlockSpec((hidden, 1), const2),                   # b1
                    pl.BlockSpec((C, hidden), const2),                   # w2
                    pl.BlockSpec((C, 1), const2),                        # b2
                    pl.BlockSpec((1, C, HW), lambda b: (b, 0, 0)),       # x slab
                ],
                out_specs=pl.BlockSpec((1, C, HW), lambda b: (b, 0, 0)),
            ),
            compiler_params=pltpu.CompilerParams(
                dimension_semantics=("parallel",),
                vmem_limit_bytes=vmem_limit,
            ),
            cost_estimate=pl.CostEstimate(
                flops=int(B * (2 * C * HW + 4 * C * hidden)),
                transcendentals=int(2 * B * (hidden + C)),
                bytes_accessed=int(2 * B * C * HW * dtype_bytes + weight_bytes),
            ),
            input_output_aliases=({4: 0} if alias_input else {}),
        )(w1_f, b1_c, w2_f, b2_c, x_flat)
        return out_flat.reshape(B, C, H, W)

    # ---- Fallback two-pass path (per-batch slab too big for VMEM) ----
    hw_tile = _choose_hw_tile(HW, C, dtype_bytes, vmem_limit, weight_bytes)
    n_hw = pl.cdiv(HW, hw_tile)
    ragged = (HW % hw_tile) != 0

    # Pass 1: streaming pooled spatial sums, accumulated in the resident
    # (1, C, 1) output block across the "arbitrary" HW axis.
    pooled_sum = pl.pallas_call(
        functools.partial(_pool_kernel, hw=HW, hw_tile=hw_tile, ragged=ragged),
        out_shape=jax.ShapeDtypeStruct((B, C, 1), jnp.float32),
        grid_spec=pltpu.PrefetchScalarGridSpec(
            num_scalar_prefetch=0,
            grid=(B, n_hw),
            in_specs=[pl.BlockSpec((1, C, hw_tile), lambda b, h: (b, 0, h))],
            out_specs=pl.BlockSpec((1, C, 1), lambda b, h: (b, 0, 0)),
        ),
        compiler_params=pltpu.CompilerParams(
            dimension_semantics=("parallel", "arbitrary"),
            vmem_limit_bytes=vmem_limit,
        ),
        cost_estimate=pl.CostEstimate(
            flops=int(B * C * HW),
            transcendentals=0,
            bytes_accessed=int(B * C * HW * dtype_bytes + 4 * B * C),
        ),
    )(x_flat)

    # Tiny squeeze/excite MLP, batched over B in plain XLA (well-shaped matmul,
    # negligible cost, keeps the streaming kernels free of MXU work).
    pooled = pooled_sum[:, :, 0] * (1.0 / float(HW))                 # (B, C)
    hmid = pooled @ w1_f.T + b1.astype(jnp.float32)
    hmid = hmid * jax.nn.sigmoid(hmid)
    gate = jax.nn.sigmoid(hmid @ w2_f.T + b2.astype(jnp.float32))    # (B, C)
    gate3 = gate[:, :, None]                                         # (B, C, 1)

    # Pass 2: tiled, fully parallel broadcast-multiply (pure HBM roofline).
    out_flat = pl.pallas_call(
        _apply_kernel,
        out_shape=jax.ShapeDtypeStruct((B, C, HW), x_dtype),
        grid_spec=pltpu.PrefetchScalarGridSpec(
            num_scalar_prefetch=0,
            grid=(B, n_hw),
            in_specs=[
                pl.BlockSpec((1, C, 1), lambda b, h: (b, 0, 0)),         # gate
                pl.BlockSpec((1, C, hw_tile), lambda b, h: (b, 0, h)),   # x tile
            ],
            out_specs=pl.BlockSpec((1, C, hw_tile), lambda b, h: (b, 0, h)),
        ),
        compiler_params=pltpu.CompilerParams(
            dimension_semantics=("parallel", "parallel"),
            vmem_limit_bytes=vmem_limit,
        ),
        cost_estimate=pl.CostEstimate(
            flops=int(B * C * HW),
            transcendentals=0,
            bytes_accessed=int(2 * B * C * HW * dtype_bytes + 4 * B * C),
        ),
        input_output_aliases=({1: 0} if alias_input else {}),
    )(gate3, x_flat)

    return out_flat.reshape(B, C, H, W)


def _reference(x, w1, b1, w2, b2):
    y = jnp.mean(x, axis=(2, 3))                 # (B, C)
    h = y @ w1.T + b1
    h = h * jax.nn.sigmoid(h)
    s = jax.nn.sigmoid(h @ w2.T + b2)            # (B, C)
    return x * s[:, :, None, None]


if __name__ == "__main__":
    # SELayer(inp=4, oup=4, reduction=4) -> hidden = _make_divisible(4 // 4, 8) = 8
    B, C, H, W = 2, 4, 16, 16
    inp = oup = C
    hidden = _make_divisible(inp // 4, 8)

    key = jax.random.PRNGKey(0)
    kx, k1, k2, k3, k4 = jax.random.split(key, 5)

    x = jax.random.normal(kx, (B, C, H, W), dtype=jnp.float32)

    # Deterministic init mimicking PyTorch Linear default (uniform +/- 1/sqrt(fan_in)).
    lim1 = 1.0 / jnp.sqrt(jnp.float32(oup))
    w1 = jax.random.uniform(k1, (hidden, oup), jnp.float32, -lim1, lim1)
    b1 = jax.random.uniform(k2, (hidden,), jnp.float32, -lim1, lim1)
    lim2 = 1.0 / jnp.sqrt(jnp.float32(hidden))
    w2 = jax.random.uniform(k3, (oup, hidden), jnp.float32, -lim2, lim2)
    b2 = jax.random.uniform(k4, (oup,), jnp.float32, -lim2, lim2)

    out = se_layer(x, w1, b1, w2, b2)
    jax.block_until_ready(out)

    ref = _reference(x, w1, b1, w2, b2)
    assert out.shape == (B, C, H, W)
    assert jnp.allclose(out, ref, atol=1e-5, rtol=1e-5)

    print("KERNEL_OK")
</pallas_src>

<mosaic_0001>
module attributes {stable_mosaic.version = 11 : i64} {
  func.func @_fused_se_kernel(%arg0: i32, %arg1: memref<8x4xf32, #tpu.memory_space<vmem>>, %arg2: memref<8x1xf32, #tpu.memory_space<vmem>>, %arg3: memref<4x8xf32, #tpu.memory_space<vmem>>, %arg4: memref<4x1xf32, #tpu.memory_space<vmem>>, %arg5: memref<1x4x256xf32, #tpu.memory_space<vmem>>, %arg6: memref<1x4x256xf32, #tpu.memory_space<vmem>>) attributes {dimension_semantics = [#tpu.dimension_semantics<parallel>], iteration_bounds = array<i64: 2>, scalar_prefetch = 0 : i64, scratch_operands = 0 : i64, tpu.core_type = #tpu.core_type<tc>, window_params = [{pipeline_mode = #tpu.pipeline_mode<synchronous>, transform_indices = @transform_0, window_bounds = array<i64: 8, 4>}, {pipeline_mode = #tpu.pipeline_mode<synchronous>, transform_indices = @transform_1, window_bounds = array<i64: 8, 1>}, {pipeline_mode = #tpu.pipeline_mode<synchronous>, transform_indices = @transform_2, window_bounds = array<i64: 4, 8>}, {pipeline_mode = #tpu.pipeline_mode<synchronous>, transform_indices = @transform_3, window_bounds = array<i64: 4, 1>}, {transform_indices = @transform_4, window_bounds = array<i64: 1, 4, 256>}, {transform_indices = @transform_5, window_bounds = array<i64: 1, 4, 256>}]} {
    %c0 = arith.constant 0 : index
    %c0_0 = arith.constant 0 : index
    %c0_1 = arith.constant 0 : index
    %0 = vector.load %arg5[%c0, %c0_0, %c0_1] : memref<1x4x256xf32, #tpu.memory_space<vmem>>, vector<1x4x256xf32>
    %1 = vector.shape_cast %0 : vector<1x4x256xf32> to vector<4x256xf32>
    %cst = arith.constant dense<0.000000e+00> : vector<4xf32>
    %2 = vector.multi_reduction <add>, %1, %cst [1] : vector<4x256xf32> to vector<4xf32>
    %3 = vector.shape_cast %2 : vector<4xf32> to vector<4x1xf32>
    %cst_2 = arith.constant 3.906250e-03 : f32
    %4 = vector.broadcast %cst_2 : f32 to vector<4x1xf32>
    %5 = arith.mulf %3, %4 : vector<4x1xf32>
    %c0_3 = arith.constant 0 : index
    %c0_4 = arith.constant 0 : index
    %6 = vector.load %arg1[%c0_3, %c0_4] : memref<8x4xf32, #tpu.memory_space<vmem>>, vector<8x4xf32>
    %cst_5 = arith.constant dense<0.000000e+00> : vector<8x1xf32>
    %7 = tpu.matmul %6, %5, %cst_5 {dimension_numbers = #tpu.dot_dimension_numbers<[1], [0], [0], [1], [0, 0, 1, 1], [], []>} : vector<8x4xf32>, vector<4x1xf32>, vector<8x1xf32> -> vector<8x1xf32>
    %c0_6 = arith.constant 0 : index
    %c0_7 = arith.constant 0 : index
    %8 = vector.load %arg2[%c0_6, %c0_7] : memref<8x1xf32, #tpu.memory_space<vmem>>, vector<8x1xf32>
    %9 = arith.addf %7, %8 : vector<8x1xf32>
    %10 = arith.negf %9 : vector<8x1xf32>
    %11 = math.exp %10 : vector<8x1xf32>
    %cst_8 = arith.constant 1.000000e+00 : f32
    %12 = vector.broadcast %cst_8 : f32 to vector<8x1xf32>
    %13 = arith.addf %12, %11 : vector<8x1xf32>
    %14 = arith.divf %12, %13 : vector<8x1xf32>
    %15 = arith.mulf %9, %14 : vector<8x1xf32>
    %c0_9 = arith.constant 0 : index
    %c0_10 = arith.constant 0 : index
    %16 = vector.load %arg3[%c0_9, %c0_10] : memref<4x8xf32, #tpu.memory_space<vmem>>, vector<4x8xf32>
    %cst_11 = arith.constant dense<0.000000e+00> : vector<4x1xf32>
    %17 = tpu.matmul %16, %15, %cst_11 {dimension_numbers = #tpu.dot_dimension_numbers<[1], [0], [0], [1], [0, 0, 1, 1], [], []>} : vector<4x8xf32>, vector<8x1xf32>, vector<4x1xf32> -> vector<4x1xf32>
    %c0_12 = arith.constant 0 : index
    %c0_13 = arith.constant 0 : index
    %18 = vector.load %arg4[%c0_12, %c0_13] : memref<4x1xf32, #tpu.memory_space<vmem>>, vector<4x1xf32>
    %19 = arith.addf %17, %18 : vector<4x1xf32>
    %20 = arith.negf %19 : vector<4x1xf32>
    %21 = math.exp %20 : vector<4x1xf32>
    %cst_14 = arith.constant 1.000000e+00 : f32
    %22 = vector.broadcast %cst_14 : f32 to vector<4x1xf32>
    %23 = arith.addf %22, %21 : vector<4x1xf32>
    %24 = arith.divf %22, %23 : vector<4x1xf32>
    %25 = vector.broadcast %24 : vector<4x1xf32> to vector<4x256xf32>
    %26 = arith.mulf %1, %25 : vector<4x256xf32>
    %c0_15 = arith.constant 0 : index
    %c0_16 = arith.constant 0 : index
    %c0_17 = arith.constant 0 : index
    %27 = vector.load %arg6[%c0_15, %c0_16, %c0_17] : memref<1x4x256xf32, #tpu.memory_space<vmem>>, vector<1x4x256xf32>
    %28 = vector.shape_cast %27 : vector<1x4x256xf32> to vector<4x256xf32>
    %29 = vector.shape_cast %26 : vector<4x256xf32> to vector<1x4x256xf32>
    tpu.vector_store %arg6[%c0_15, %c0_16, %c0_17], %29 {strides = array<i32>} : memref<1x4x256xf32, #tpu.memory_space<vmem>>, vector<1x4x256xf32>,
    return
  }
  func.func @transform_0(%arg0: i32) -> (i32, i32) {
    %c0_i32 = arith.constant 0 : i32
    %c0_i32_0 = arith.constant 0 : i32
    %c0_i32_1 = arith.constant 0 : i32
    return %c0_i32, %c0_i32_0 : i32, i32
  }
  func.func @transform_1(%arg0: i32) -> (i32, i32) {
    %c0_i32 = arith.constant 0 : i32
    %c0_i32_0 = arith.constant 0 : i32
    %c0_i32_1 = arith.constant 0 : i32
    return %c0_i32, %c0_i32_0 : i32, i32
  }
  func.func @transform_2(%arg0: i32) -> (i32, i32) {
    %c0_i32 = arith.constant 0 : i32
    %c0_i32_0 = arith.constant 0 : i32
    %c0_i32_1 = arith.constant 0 : i32
    return %c0_i32, %c0_i32_0 : i32, i32
  }
  func.func @transform_3(%arg0: i32) -> (i32, i32) {
    %c0_i32 = arith.constant 0 : i32
    %c0_i32_0 = arith.constant 0 : i32
    %c0_i32_1 = arith.constant 0 : i32
    return %c0_i32, %c0_i32_0 : i32, i32
  }
  func.func @transform_4(%arg0: i32) -> (i32, i32, i32) {
    %c0_i32 = arith.constant 0 : i32
    %c0_i32_0 = arith.constant 0 : i32
    %c0_i32_1 = arith.constant 0 : i32
    return %arg0, %c0_i32, %c0_i32_0 : i32, i32, i32
  }
  func.func @transform_5(%arg0: i32) -> (i32, i32, i32) {
    %c0_i32 = arith.constant 0 : i32
    %c0_i32_0 = arith.constant 0 : i32
    %c0_i32_1 = arith.constant 0 : i32
    return %arg0, %c0_i32, %c0_i32_0 : i32, i32, i32
  }
}

</mosaic_0001>

<llo_original>
// kernel: tpu_custom_call.1
$region0: #{tpu_custom_call.1}
  #allocation0 [shape = 'u32[]', space=smem, size = 0x4, offset = 0x4, fixed_abs, tag = 'smem constant byte address 0x4 - core index']
  #allocation1 [shape = 'u32[144,128]{1,0:T(1,128)}', space=vmem, size = 0x12000, scoped, tag = 'internal scratch']
  %s0 = inlined_call_operand.hbm [shape: f32[8,4], index: 0, kind: input, shape index: {}]
  %s1 = inlined_call_operand.hbm [shape: f32[8,1], index: 1, kind: input, shape index: {}]
  %s2 = inlined_call_operand.hbm [shape: f32[4,8], index: 2, kind: input, shape index: {}]
  %s3 = inlined_call_operand.hbm [shape: f32[4,1], index: 3, kind: input, shape index: {}]
  %s4 = inlined_call_operand.hbm [shape: f32[2,4,256], index: 4, kind: input, shape index: {}]
  %s5 = inlined_call_operand.hbm [shape: f32[2,4,256], index: 5, kind: output, shape index: {}]
  %s6 = sld [smem:[#allocation0]]
  $region73: #{tpu_custom_call.1} parent=0
    _
  %s8 = ssub.s32 1, %s6
  %s9 = scalar_select 0, %s8, %s6
  $region1: #{tpu_custom_call.1} parent=0
    #allocation2 [shape = 'u8[4096]{0}', space=vmem, size = 0x1000, scoped, tag = 'input window, operand 0, single buffered']
    #allocation3 [shape = 's32[2]{0}', space=sflag, size = 0x8, scoped, tag = 'scoped memory for tpu_custom_call.1']
    #allocation4 [shape = 's32[2]{0}', space=sflag, size = 0x8, scoped, tag = 'scoped memory for tpu_custom_call.1']
    #allocation5 [shape = 'u8[4096]{0}', space=vmem, size = 0x1000, scoped, tag = 'input window, operand 1, single buffered']
    #allocation6 [shape = 's32[1]{0}', space=sflag, size = 0x4, scoped, tag = 'scoped memory for tpu_custom_call.1']
    #allocation7 [shape = 'u8[2048]{0}', space=vmem, size = 0x800, scoped, tag = 'input window, operand 2, single buffered']
    #allocation8 [shape = 'u8[2048]{0}', space=vmem, size = 0x800, scoped, tag = 'input window, operand 3, single buffered']
    #allocation9 [shape = 's32[1]{0}', space=sflag, size = 0x4, scoped, tag = 'scoped memory for tpu_custom_call.1']
    #allocation10 [shape = 'u8[8192]{0}', space=vmem, size = 0x2000, scoped, tag = 'input window, operand 4']
    #allocation11 [shape = 'u8[8192]{0}', space=vmem, size = 0x2000, scoped, tag = 'output window, operand 0']
    %10 = vsyncpa [#allocation3], 0
    %11 = vsyncpa [#allocation6], 0
    %12 = vsyncpa [#allocation9], 0
    %13 = vsyncpa [#allocation4], 0
    %s14 = scalar_lea.sflag [#allocation4], 1
    %15 = vsyncpa %s14, 0
    loop: start=0, step=1, limit=4
    $region2: #{tpu_custom_call.1} parent=1 // loop_pre_header
      _
    $region3: #{tpu_custom_call.1} parent=1 // loop_header
      %s17 = sphi 0, %s21
      %p18 = scmp.ge.s32.totalorder %s17, 4
      %s25 = sphi 0, %s25
      %s27 = sphi 0, %s25
      %s28 = sphi 0, %s27
      %s42 = sphi 0, %s28
      %s46 = sphi 0, %s46
      %s48 = sphi 0, %s46
      %s49 = sphi 0, %s48
      %s63 = sphi 0, %s49
      %s67 = sphi 0, %s67
      %s69 = sphi 0, %s67
      %s70 = sphi 0, %s69
      %s84 = sphi 0, %s70
      %s88 = sphi 0, %s88
      %s90 = sphi 0, %s88
      %s91 = sphi 0, %s90
      %s105 = sphi 0, %s91
      %s111 = sphi 0, %s113
      %s114 = sphi 0, %s111
      %s115 = sphi 0, %s114
      %s131 = sphi 0, %s115
      %s137 = sphi 0, %s139
      %s140 = sphi 0, %s137
      %s141 = sphi 0, %s140
      %s157 = sphi 0, %s141
    $region4: #{tpu_custom_call.1} parent=1 // loop_header_branch
      %20 = sbr.rel (%p18) target = $region8
    $region5: #{tpu_custom_call.1} parent=1 // loop_body
      %s22 = ssub.s32 %s17, 1
      %s23 = ssub.s32 %s17, 2
      %s24 = sadd.s32 %s17, 1
      %s26 = sadd.s32 %s25, 1
      %p29 = scmp.eq.s32.totalorder %s17, 1
      %p30 = scmp.ne.s32.totalorder %s25, %s27
      %p31 = scmp.eq.s32.totalorder %s17, 0
      %p32 = por %p30, %p31
      %p33 = scmp.ne.s32.totalorder %s25, %s27
      %p34 = scmp.eq.s32.totalorder %s22, 1
      %p35 = por %p33, %p34
      %p36 = scmp.ne.s32.totalorder %s27, %s28
      %p37 = scmp.eq.s32.totalorder %s22, 0
      %p38 = por %p36, %p37
      %p39 = scmp.ne.s32.totalorder %s27, %s28
      %p40 = scmp.eq.s32.totalorder %s23, 1
      %p41 = por %p39, %p40
      %p43 = scmp.ne.s32.totalorder %s28, %s42
      %p44 = scmp.eq.s32.totalorder %s23, 0
      %p45 = por %p43, %p44
      %s47 = sadd.s32 %s46, 1
      %p50 = scmp.eq.s32.totalorder %s17, 1
      %p51 = scmp.ne.s32.totalorder %s46, %s48
      %p52 = scmp.eq.s32.totalorder %s17, 0
      %p53 = por %p51, %p52
      %p54 = scmp.ne.s32.totalorder %s46, %s48
      %p55 = scmp.eq.s32.totalorder %s22, 1
      %p56 = por %p54, %p55
      %p57 = scmp.ne.s32.totalorder %s48, %s49
      %p58 = scmp.eq.s32.totalorder %s22, 0
      %p59 = por %p57, %p58
      %p60 = scmp.ne.s32.totalorder %s48, %s49
      %p61 = scmp.eq.s32.totalorder %s23, 1
      %p62 = por %p60, %p61
      %p64 = scmp.ne.s32.totalorder %s49, %s63
      %p65 = scmp.eq.s32.totalorder %s23, 0
      %p66 = por %p64, %p65
      %s68 = sadd.s32 %s67, 1
      %p71 = scmp.eq.s32.totalorder %s17, 1
      %p72 = scmp.ne.s32.totalorder %s67, %s69
      %p73 = scmp.eq.s32.totalorder %s17, 0
      %p74 = por %p72, %p73
      %p75 = scmp.ne.s32.totalorder %s67, %s69
      %p76 = scmp.eq.s32.totalorder %s22, 1
      %p77 = por %p75, %p76
      %p78 = scmp.ne.s32.totalorder %s69, %s70
      %p79 = scmp.eq.s32.totalorder %s22, 0
      %p80 = por %p78, %p79
      %p81 = scmp.ne.s32.totalorder %s69, %s70
      %p82 = scmp.eq.s32.totalorder %s23, 1
      %p83 = por %p81, %p82
      %p85 = scmp.ne.s32.totalorder %s70, %s84
      %p86 = scmp.eq.s32.totalorder %s23, 0
      %p87 = por %p85, %p86
      %s89 = sadd.s32 %s88, 1
      %p92 = scmp.eq.s32.totalorder %s17, 1
      %p93 = scmp.ne.s32.totalorder %s88, %s90
      %p94 = scmp.eq.s32.totalorder %s17, 0
      %p95 = por %p93, %p94
      %p96 = scmp.ne.s32.totalorder %s88, %s90
      %p97 = scmp.eq.s32.totalorder %s22, 1
      %p98 = por %p96, %p97
      %p99 = scmp.ne.s32.totalorder %s90, %s91
      %p100 = scmp.eq.s32.totalorder %s22, 0
      %p101 = por %p99, %p100
      %p102 = scmp.ne.s32.totalorder %s90, %s91
      %p103 = scmp.eq.s32.totalorder %s23, 1
      %p104 = por %p102, %p103
      %p106 = scmp.ne.s32.totalorder %s91, %s105
      %p107 = scmp.eq.s32.totalorder %s23, 0
      %p108 = por %p106, %p107
      %s109 = ssub.s32 %s17, %s24
      %p110 = scmp.eq.s32.totalorder %s109, 0
      %s112 = sadd.s32 %s111, 1
      %s113 = scalar_select %p110, %s111, %s112
      %p116 = pneg %p110
      %p117 = scmp.eq.s32.totalorder %s17, 1
      %p118 = por %p116, %p117
      %p119 = scmp.ne.s32.totalorder %s111, %s114
      %p120 = scmp.eq.s32.totalorder %s17, 0
      %p121 = por %p119, %p120
      %p122 = scmp.ne.s32.totalorder %s111, %s114
      %p123 = scmp.eq.s32.totalorder %s22, 1
      %p124 = por %p122, %p123
      %p125 = scmp.ne.s32.totalorder %s114, %s115
      %p126 = scmp.eq.s32.totalorder %s22, 0
      %p127 = por %p125, %p126
      %p128 = scmp.ne.s32.totalorder %s114, %s115
      %p129 = scmp.eq.s32.totalorder %s23, 1
      %p130 = por %p128, %p129
      %p132 = scmp.ne.s32.totalorder %s115, %s131
      %p133 = scmp.eq.s32.totalorder %s23, 0
      %p134 = por %p132, %p133
      %s135 = ssub.s32 %s17, %s24
      %p136 = scmp.eq.s32.totalorder %s135, 0
      %s138 = sadd.s32 %s137, 1
      %s139 = scalar_select %p136, %s137, %s138
      %p142 = pneg %p136
      %p143 = scmp.eq.s32.totalorder %s17, 1
      %p144 = por %p142, %p143
      %p145 = scmp.ne.s32.totalorder %s137, %s140
      %p146 = scmp.eq.s32.totalorder %s17, 0
      %p147 = por %p145, %p146
      %p148 = scmp.ne.s32.totalorder %s137, %s140
      %p149 = scmp.eq.s32.totalorder %s22, 1
      %p150 = por %p148, %p149
      %p151 = scmp.ne.s32.totalorder %s140, %s141
      %p152 = scmp.eq.s32.totalorder %s22, 0
      %p153 = por %p151, %p152
      %p154 = scmp.ne.s32.totalorder %s140, %s141
      %p155 = scmp.eq.s32.totalorder %s23, 1
      %p156 = por %p154, %p155
      %p158 = scmp.ne.s32.totalorder %s141, %s157
      %p159 = scmp.eq.s32.totalorder %s23, 0
      %p160 = por %p158, %p159
      %p161 = scmp.le.s32.totalorder 1, %s17
      %p162 = scmp.lt.s32.totalorder %s17, 3
      %p163 = pnand %p161, %p162
      %p164 = pneg %p163
      // Predicated region
      $region9: #{tpu_custom_call.1} parent=5 // pred_check
        _
      $region10: #{tpu_custom_call.1} parent=5 // pred_check_branch
        %166 = sbr.rel (%p163) target = $region12
      $region11: #{tpu_custom_call.1} parent=5 // pred_region
        %s167 = ssub.s32 %s17, 1
        // Predicated region
        $region13: #{tpu_custom_call.1} parent=11 // pred_check
          %p168 = pneg %p38
        $region14: #{tpu_custom_call.1} parent=11 // pred_check_branch
          %170 = sbr.rel (%p168) target = $region16
        $region15: #{tpu_custom_call.1} parent=11 // pred_region
          %s172 = ssub.s32 128, 128
          %173 = vsyncadd [#allocation3], %s172
          %s175 = sshll.u32 [#allocation2], 4
          %s176 = int_to_ptr.vmem [resolvable:$true] %s175
          %178 = dma.hbm_to_vmem [thread:$0]  %s0, 128, %s176, [#allocation3]
        $region16: #{tpu_custom_call.1} parent=11 // pred_fallthru
          _
        // Predicated region
        $region17: #{tpu_custom_call.1} parent=11 // pred_check
          %p179 = pneg %p59
        $region18: #{tpu_custom_call.1} parent=11 // pred_check_branch
          %181 = sbr.rel (%p179) target = $region20
        $region19: #{tpu_custom_call.1} parent=11 // pred_region
          %s183 = ssub.s32 128, 128
          %184 = vsyncadd [#allocation6], %s183
          %s186 = sshll.u32 [#allocation5], 4
          %s187 = int_to_ptr.vmem [resolvable:$true] %s186
          %189 = dma.hbm_to_vmem [thread:$0]  %s1, 128, %s187, [#allocation6]
        $region20: #{tpu_custom_call.1} parent=11 // pred_fallthru
          _
        // Predicated region
        $region21: #{tpu_custom_call.1} parent=11 // pred_check
          %p190 = pneg %p80
        $region22: #{tpu_custom_call.1} parent=11 // pred_check_branch
          %192 = sbr.rel (%p190) target = $region24
        $region23: #{tpu_custom_call.1} parent=11 // pred_region
          %s194 = ssub.s32 64, 64
          %195 = vsyncadd [#allocation6], %s194
          %s197 = sshll.u32 [#allocation7], 4
          %s198 = int_to_ptr.vmem [resolvable:$true] %s197
          %200 = dma.hbm_to_vmem [thread:$0]  %s2, 64, %s198, [#allocation6]
        $region24: #{tpu_custom_call.1} parent=11 // pred_fallthru
          _
        // Predicated region
        $region25: #{tpu_custom_call.1} parent=11 // pred_check
          %p201 = pneg %p101
        $region26: #{tpu_custom_call.1} parent=11 // pred_check_branch
          %203 = sbr.rel (%p201) target = $region28
        $region27: #{tpu_custom_call.1} parent=11 // pred_region
          %s205 = ssub.s32 64, 64
          %206 = vsyncadd [#allocation9], %s205
          %s208 = sshll.u32 [#allocation8], 4
          %s209 = int_to_ptr.vmem [resolvable:$true] %s208
          %211 = dma.hbm_to_vmem [thread:$0]  %s3, 64, %s209, [#allocation9]
        $region28: #{tpu_custom_call.1} parent=11 // pred_fallthru
          _
      $region12: #{tpu_custom_call.1} parent=5 // pred_fallthru
        _
      %p212 = scmp.lt.s32.totalorder %s17, 2
      // Predicated region
      $region29: #{tpu_custom_call.1} parent=5 // pred_check
        %p213 = pneg %p212
      $region30: #{tpu_custom_call.1} parent=5 // pred_check_branch
        %215 = sbr.rel (%p213) target = $region32
      $region31: #{tpu_custom_call.1} parent=5 // pred_region
        // Predicated region
        $region33: #{tpu_custom_call.1} parent=31 // pred_check
          %p216 = pneg %p121
        $region34: #{tpu_custom_call.1} parent=31 // pred_check_branch
          %218 = sbr.rel (%p216) target = $region36
        $region35: #{tpu_custom_call.1} parent=31 // pred_region
          %s219 = sand.u32 %s17, 1
          %s220 = scalar_lea.sflag [#allocation3], %s219
          %s221 = sand.u32 %s111, 1
          %s222 = smul.addr %s221, 8
          %s223 = scalar_lea.vmem [#allocation10], %s222
          %s225 = ssub.s32 128, 128
          %226 = vsyncadd %s220, %s225
          %s227 = smul.addr %s17, 2
          %s228 = smul.addr %s227, 64
          %s229 = scalar_lea.hbm %s4, %s228
          %s231 = sshll.u32 %s223, 4
          %s232 = int_to_ptr.vmem [resolvable:$true] %s231
          %234 = dma.hbm_to_vmem [thread:$0]  %s229, 128, %s232, %s220
        $region36: #{tpu_custom_call.1} parent=31 // pred_fallthru
          _
      $region32: #{tpu_custom_call.1} parent=5 // pred_fallthru
        _
      %p235 = scmp.le.s32.totalorder 1, %s17
      %p236 = scmp.lt.s32.totalorder %s17, 3
      %p237 = pnand %p235, %p236
      %p238 = pneg %p237
      // Predicated region
      $region37: #{tpu_custom_call.1} parent=5 // pred_check
        _
      $region38: #{tpu_custom_call.1} parent=5 // pred_check_branch
        %240 = sbr.rel (%p237) target = $region40
      $region39: #{tpu_custom_call.1} parent=5 // pred_region
        %s241 = ssub.s32 %s17, 1
        // Predicated region
        $region41: #{tpu_custom_call.1} parent=39 // pred_check
          %p242 = pneg %p38
        $region42: #{tpu_custom_call.1} parent=39 // pred_check_branch
          %244 = sbr.rel (%p242) target = $region44
        $region43: #{tpu_custom_call.1} parent=39 // pred_region
          %245 = dma.done [#allocation3], 128
        $region44: #{tpu_custom_call.1} parent=39 // pred_fallthru
          _
        // Predicated region
        $region45: #{tpu_custom_call.1} parent=39 // pred_check
          %p246 = pneg %p59
        $region46: #{tpu_custom_call.1} parent=39 // pred_check_branch
          %248 = sbr.rel (%p246) target = $region48
        $region47: #{tpu_custom_call.1} parent=39 // pred_region
          %249 = dma.done [#allocation6], 128
        $region48: #{tpu_custom_call.1} parent=39 // pred_fallthru
          _
        // Predicated region
        $region49: #{tpu_custom_call.1} parent=39 // pred_check
          %p250 = pneg %p80
        $region50: #{tpu_custom_call.1} parent=39 // pred_check_branch
          %252 = sbr.rel (%p250) target = $region52
        $region51: #{tpu_custom_call.1} parent=39 // pred_region
          %253 = dma.done [#allocation6], 64
        $region52: #{tpu_custom_call.1} parent=39 // pred_fallthru
          _
        // Predicated region
        $region53: #{tpu_custom_call.1} parent=39 // pred_check
          %p254 = pneg %p101
        $region54: #{tpu_custom_call.1} parent=39 // pred_check_branch
          %256 = sbr.rel (%p254) target = $region56
        $region55: #{tpu_custom_call.1} parent=39 // pred_region
          %257 = dma.done [#allocation9], 64
        $region56: #{tpu_custom_call.1} parent=39 // pred_fallthru
          _
        %s258 = sand.u32 %s22, 1
        %s259 = scalar_lea.sflag [#allocation3], %s258
        %s260 = sand.u32 %s114, 1
        %s261 = smul.addr %s260, 8
        %s262 = scalar_lea.vmem [#allocation10], %s261
        // Predicated region
        $region57: #{tpu_custom_call.1} parent=39 // pred_check
          %p263 = pneg %p127
        $region58: #{tpu_custom_call.1} parent=39 // pred_check_branch
          %265 = sbr.rel (%p263) target = $region60
        $region59: #{tpu_custom_call.1} parent=39 // pred_region
          %266 = dma.done %s259, 128
        $region60: #{tpu_custom_call.1} parent=39 // pred_fallthru
          _
        %p267 = pneg %p38
        %p268 = pneg %p35
        %p269 = pneg %p59
        %p270 = pneg %p56
        %p271 = pneg %p80
        %p272 = pneg %p77
        %p273 = pneg %p101
        %p274 = pneg %p98
        %s275 = sand.u32 %s22, 1
        %s276 = scalar_lea.sflag [#allocation3], %s275
        %s277 = sand.u32 %s114, 1
        %s278 = smul.addr %s277, 8
        %s279 = scalar_lea.vmem [#allocation10], %s278
        %p280 = pneg %p127
        %p281 = pneg %p124
        %p282 = pneg %p153
        %p283 = pneg %p150
        %s284 = sand.u32 %s140, 1
        %s285 = scalar_lea.sflag [#allocation4], %s284
        %s286 = sand.u32 %s140, 1
        %s287 = smul.addr %s286, 8
        %s288 = scalar_lea.vmem [#allocation11], %s287
        %v289 = vld [vmem:[%s262] sm:$0xff]
        %v291 = vcombine.high %v289, %v289
        %vm293 = vcmask 1043456
        %v294 = vsel %vm293, %v289, 0.0
        %v295 = vsel %vm293, %v291, 0.0
        %v296 = vadd.f32 %v294, %v295
        %297 = vadd.xlane.f32.xlu0 %v296
        %v298 = vpop.xlane.xlu0 %297
        %v299 = vmul.f32 %v298, 0.00390625
        %v300 = vld [vmem:[#allocation2] sm:$0xff]
        %v301 = vld [vmem:[#allocation5] sm:$0xff]
        %vm302 = vcmask 31744
        %v304 = vsel %vm302, %v300, 0
        %v307 = vsel %vm293, %v299, 0
        %309 = vmatprep.subr.mxu0 0.0
        %310 = vmatpush1.msra.mxu0 %v307
        %311 = vmatprep.subr.mxu0 0.0
        %312 = vmatpush1.msra.mxu0 0.0
        %313 = vmatprep.subr.mxu0 0.0
        %314 = vmatpush1.msra.mxu0 0.0
        %315 = vmatprep.subr.mxu0 0.0
        %316 = vmatpush1.msra.mxu0 0.0
        %317 = vmatprep.subr.mxu0 0.0
        %318 = vmatpush1.msra.mxu0 0.0
        %319 = vmatprep.subr.mxu0 0.0
        %320 = vmatpush1.msra.mxu0 0.0
        %321 = vmatprep.subr.mxu0 0.0
        %322 = vmatpush1.msra.mxu0 0.0
        %323 = vmatprep.subr.mxu0 0.0
        %324 = vmatpush1.msra.mxu0 0.0
        %325 = vmatprep.subr.mxu0 0.0
        %326 = vmatpush1.msra.mxu0 0.0
        %327 = vmatprep.subr.mxu0 0.0
        %328 = vmatpush1.msra.mxu0 0.0
        %329 = vmatprep.subr.mxu0 0.0
        %330 = vmatpush1.msra.mxu0 0.0
        %331 = vmatprep.subr.mxu0 0.0
        %332 = vmatpush1.msra.mxu0 0.0
        %333 = vmatprep.subr.mxu0 0.0
        %334 = vmatpush1.msra.mxu0 0.0
        %335 = vmatprep.subr.mxu0 0.0
        %336 = vmatpush1.msra.mxu0 0.0
        %337 = vmatprep.subr.mxu0 0.0
        %338 = vmatpush1.msra.mxu0 0.0
        %339 = vmatprep.subr.mxu0 0.0
        %340 = vmatpush1.msra.mxu0 0.0
        %341 = vmatprep.subr.mxu0 0.0
        %342 = vmatpush1.msra.mxu0 0.0
        %343 = vmatprep.subr.mxu0 0.0
        %344 = vmatpush1.msra.mxu0 0.0
        %345 = vmatprep.subr.mxu0 0.0
        %346 = vmatpush1.msra.mxu0 0.0
        %347 = vmatprep.subr.mxu0 0.0
        %348 = vmatpush1.msra.mxu0 0.0
        %349 = vmatprep.subr.mxu0 0.0
        %350 = vmatpush1.msra.mxu0 0.0
        %351 = vmatprep.subr.mxu0 0.0
        %352 = vmatpush1.msra.mxu0 0.0
        %353 = vmatprep.subr.mxu0 0.0
        %354 = vmatpush1.msra.mxu0 0.0
        %355 = vmatprep.subr.mxu0 0.0
        %356 = vmatpush1.msra.mxu0 0.0
        %357 = vmatprep.subr.mxu0 0.0
        %358 = vmatpush1.msra.mxu0 0.0
        %359 = vmatprep.subr.mxu0 0.0
        %360 = vmatpush1.msra.mxu0 0.0
        %361 = vmatprep.subr.mxu0 0.0
        %362 = vmatpush1.msra.mxu0 0.0
        %363 = vmatprep.subr.mxu0 0.0
        %364 = vmatpush1.msra.mxu0 0.0
        %365 = vmatprep.subr.mxu0 0.0
        %366 = vmatpush1.msra.mxu0 0.0
        %367 = vmatprep.subr.mxu0 0.0
        %368 = vmatpush1.msra.mxu0 0.0
        %369 = vmatprep.subr.mxu0 0.0
        %370 = vmatpush1.msra.mxu0 0.0
        %371 = vmatprep.subr.mxu0 0.0
        %372 = vmatpush1.msra.mxu0 0.0
        %373 = vmatprep.mubr.f32.mxu0 0.0
        %374 = vmatmul.mubr.f32.gmra.mrb[0].mxu0 %v304
        %v375 = vpop.f32.mrb[0].mxu0
        %v376 = vadd.f32 %v301, %v375
        %v377 = vpop.f32.mrb[0].mxu0
        %378 = vdwg.mxu0
        %v379 = vxor.u32 %v376, 2147483648
        %v380 = vmul.f32 %v379, 1.442695
        %v381 = vpow.pop %v380
        %v382 = vadd.f32 %v381, 1.0
        %v383 = vrcp.pop %v382
        %v384 = vmul.f32 1.0, %v383
        %v385 = vmul.f32 %v376, %v384
        %v386 = vld [vmem:[#allocation7] sm:$0xf]
        %v387 = vld [vmem:[#allocation8] sm:$0xf]
        %vm388 = vcmask 64512
        %v390 = vsel %vm388, %v386, 0
        %392 = vmatprep.subr.mxu0 0.0
        %393 = vmatpush1.msra.mxu0 %v385
        %394 = vmatprep.subr.mxu0 0.0
        %395 = vmatpush1.msra.mxu0 0.0
        %396 = vmatprep.subr.mxu0 0.0
        %397 = vmatpush1.msra.mxu0 0.0
        %398 = vmatprep.subr.mxu0 0.0
        %399 = vmatpush1.msra.mxu0 0.0
        %400 = vmatprep.subr.mxu0 0.0
        %401 = vmatpush1.msra.mxu0 0.0
        %402 = vmatprep.subr.mxu0 0.0
        %403 = vmatpush1.msra.mxu0 0.0
        %404 = vmatprep.subr.mxu0 0.0
        %405 = vmatpush1.msra.mxu0 0.0
        %406 = vmatprep.subr.mxu0 0.0
        %407 = vmatpush1.msra.mxu0 0.0
        %408 = vmatprep.subr.mxu0 0.0
        %409 = vmatpush1.msra.mxu0 0.0
        %410 = vmatprep.subr.mxu0 0.0
        %411 = vmatpush1.msra.mxu0 0.0
        %412 = vmatprep.subr.mxu0 0.0
        %413 = vmatpush1.msra.mxu0 0.0
        %414 = vmatprep.subr.mxu0 0.0
        %415 = vmatpush1.msra.mxu0 0.0
        %416 = vmatprep.subr.mxu0 0.0
        %417 = vmatpush1.msra.mxu0 0.0
        %418 = vmatprep.subr.mxu0 0.0
        %419 = vmatpush1.msra.mxu0 0.0
        %420 = vmatprep.subr.mxu0 0.0
        %421 = vmatpush1.msra.mxu0 0.0
        %422 = vmatprep.subr.mxu0 0.0
        %423 = vmatpush1.msra.mxu0 0.0
        %424 = vmatprep.subr.mxu0 0.0
        %425 = vmatpush1.msra.mxu0 0.0
        %426 = vmatprep.subr.mxu0 0.0
        %427 = vmatpush1.msra.mxu0 0.0
        %428 = vmatprep.subr.mxu0 0.0
        %429 = vmatpush1.msra.mxu0 0.0
        %430 = vmatprep.subr.mxu0 0.0
        %431 = vmatpush1.msra.mxu0 0.0
        %432 = vmatprep.subr.mxu0 0.0
        %433 = vmatpush1.msra.mxu0 0.0
        %434 = vmatprep.subr.mxu0 0.0
        %435 = vmatpush1.msra.mxu0 0.0
        %436 = vmatprep.subr.mxu0 0.0
        %437 = vmatpush1.msra.mxu0 0.0
        %438 = vmatprep.subr.mxu0 0.0
        %439 = vmatpush1.msra.mxu0 0.0
        %440 = vmatprep.subr.mxu0 0.0
        %441 = vmatpush1.msra.mxu0 0.0
        %442 = vmatprep.subr.mxu0 0.0
        %443 = vmatpush1.msra.mxu0 0.0
        %444 = vmatprep.subr.mxu0 0.0
        %445 = vmatpush1.msra.mxu0 0.0
        %446 = vmatprep.subr.mxu0 0.0
        %447 = vmatpush1.msra.mxu0 0.0
        %448 = vmatprep.subr.mxu0 0.0
        %449 = vmatpush1.msra.mxu0 0.0
        %450 = vmatprep.subr.mxu0 0.0
        %451 = vmatpush1.msra.mxu0 0.0
        %452 = vmatprep.subr.mxu0 0.0
        %453 = vmatpush1.msra.mxu0 0.0
        %454 = vmatprep.subr.mxu0 0.0
        %455 = vmatpush1.msra.mxu0 0.0
        %456 = vmatprep.mubr.f32.mxu0 0.0
        %457 = vmatmul.mubr.f32.gmra.mrb[0].mxu0 %v390
        %v458 = vpop.f32.mrb[0].mxu0
        %v459 = vadd.f32 %v387, %v458
        %v460 = vpop.f32.mrb[0].mxu0
        %461 = vdwg.mxu0
        %v462 = vxor.u32 %v459, 2147483648
        %v463 = vmul.f32 %v462, 1.442695
        %v464 = vpow.pop %v463
        %v465 = vadd.f32 %v464, 1.0
        %v466 = vrcp.pop %v465
        %v467 = vmul.f32 1.0, %v466
        %469 = vset.pattern.permute.xlu0 0
        %470 = vperm.xlu0 %469, %v467
        %v471 = vpop.permute.xlu0 %470
        %v473 = vunpack.c.l.s4 839922192
        %v474 = vunpack.c.0.s8 %v473
        %v475 = vlaneseq
        %v476 = vshrl.u32 %v475, 7
        %v477 = vsub.s32 %v474, %v476
        %v478 = vrot.slane %v471, %v477
        %v480 = vmul.f32 %v289, %v478
        %481 = vst [vmem:[%s288] sm:$0xff] %v480
        %s482 = sand.u32 %s140, 1
        %s483 = scalar_lea.sflag [#allocation4], %s482
        %s484 = sand.u32 %s140, 1
        %s485 = smul.addr %s484, 8
        %s486 = scalar_lea.vmem [#allocation11], %s485
        // Predicated region
        $region61: #{tpu_custom_call.1} parent=39 // pred_check
          %p487 = pneg %p150
        $region62: #{tpu_custom_call.1} parent=39 // pred_check_branch
          %489 = sbr.rel (%p487) target = $region64
        $region63: #{tpu_custom_call.1} parent=39 // pred_region
          %s491 = ssub.s32 128, 128
          %492 = vsyncadd %s483, %s491
          %s493 = smul.addr %s22, 2
          %s494 = smul.addr %s493, 64
          %s495 = scalar_lea.hbm %s5, %s494
          %s497 = sshll.u32 %s486, 4
          %s498 = int_to_ptr.vmem [resolvable:$true] %s497
          %500 = dma.vmem_to_hbm [thread:$0]  %s498, 128, %s495, %s483
        $region64: #{tpu_custom_call.1} parent=39 // pred_fallthru
          _
      $region40: #{tpu_custom_call.1} parent=5 // pred_fallthru
        _
      %p501 = scmp.le.s32.totalorder 2, %s17
      // Predicated region
      $region65: #{tpu_custom_call.1} parent=5 // pred_check
        %p502 = pneg %p501
      $region66: #{tpu_custom_call.1} parent=5 // pred_check_branch
        %504 = sbr.rel (%p502) target = $region68
      $region67: #{tpu_custom_call.1} parent=5 // pred_region
        %s505 = ssub.s32 %s17, 2
        // Predicated region
        $region69: #{tpu_custom_call.1} parent=67 // pred_check
          %p506 = pneg %p156
        $region70: #{tpu_custom_call.1} parent=67 // pred_check_branch
          %508 = sbr.rel (%p506) target = $region72
        $region71: #{tpu_custom_call.1} parent=67 // pred_region
          %s509 = sand.u32 %s141, 1
          %s510 = scalar_lea.sflag [#allocation4], %s509
          %s511 = sand.u32 %s141, 1
          %s512 = smul.addr %s511, 8
          %s513 = scalar_lea.vmem [#allocation11], %s512
          %514 = dma.done %s510, 128
        $region72: #{tpu_custom_call.1} parent=67 // pred_fallthru
          _
      $region68: #{tpu_custom_call.1} parent=5 // pred_fallthru
        _
    $region6: #{tpu_custom_call.1} parent=1 // loop_footer
      %s21 = sadd.s32 1, %s17
    $region7: #{tpu_custom_call.1} parent=1 // loop_footer_branch
      %16 = sbr.rel target = $region3
    $region8: #{tpu_custom_call.1} parent=1 // loop_exit
      _
    %515 = vsyncpa [#allocation3], 1
    %s516 = scalar_lea.sflag [#allocation3], 1
    %517 = vsyncpa %s516, 1
    %518 = vsyncpa [#allocation6], 1
    %519 = vsyncpa [#allocation9], 1
    %520 = vsyncpa [#allocation4], 1
    %s521 = scalar_lea.sflag [#allocation4], 1
    %522 = vsyncpa %s521, 1

</llo_original>
